<compile_context>
chip_gen: v7x
topology: tpu7x:2x2x1
jax: 0.10.0
libtpu: 0.0.40
codegen_flags: <defaults>
</compile_context>

<pallas_src>
import functools
import numpy as np
import jax
import jax.numpy as jnp
from jax.experimental import pallas as pl
from jax.experimental.pallas import tpu as pltpu

# ---------------- problem sizes ----------------
N, CIN, H, W = 2, 4, 16, 16      # input  (N, CIN, H, W)  NCHW (PyTorch)
COUT = 32                        # conv output channels -> embedding dim
KH = KW = 3                      # 3x3 conv, stride 1, padding 1
K = KH * KW * CIN                # im2col contraction dim = 36
KPAD = 128                       # padded contraction dim (MXU lane width)
FC_OUT = 10                      # fc layer (never applied -> broken at 'fc')


# ------------- Pallas kernel: (im2col-conv + folded BN/bias) + ReLU + GAP ----
def _embed_kernel(patches_ref, w_ref, out_ref, *, n, hw, cout):
    # patches_ref : (n*hw, KPAD)  lane-dense im2col patches; col K is a 1s
    #               "bias lane", cols K+1.. are zero padding.
    # w_ref       : (KPAD, cout)  BN-scaled conv weights; row K is the folded
    #               conv-bias + BN shift, rows K+1.. are zero.
    # out_ref     : (n, cout)     embedding rows for the whole batch.
    z = jnp.dot(patches_ref[...], w_ref[...],
                preferred_element_type=jnp.float32)        # single MXU matmul
    z = jnp.maximum(z, 0.0)                                # ReLU (shift already in)
    pooled = jnp.sum(z.reshape(n, hw, cout), axis=1)       # per-image spatial sum
    out_ref[...] = (pooled * (1.0 / hw)).astype(out_ref.dtype)


def conv_bn_relu_gap(x_nchw, w_folded_padded):
    """Fused backbone (everything before 'fc').  Returns (N, COUT) embedding."""
    n, cin, h, w = x_nchw.shape
    cout = w_folded_padded.shape[-1]
    hw = h * w
    k = KH * KW * cin

    # ---- XLA glue (fused by the surrounding jit): layout + im2col ----
    # NCHW -> NHWC, pad spatial dims by 1 ('SAME' for a 3x3 conv).
    x_nhwc = jnp.transpose(x_nchw, (0, 2, 3, 1))
    x_pad = jnp.pad(x_nhwc, ((0, 0), (1, 1), (1, 1), (0, 0)))
    # im2col: (N, H, W, KH*KW*CIN) in (kh, kw, cin) order, then (N*H*W, K).
    patches = jnp.concatenate(
        [x_pad[:, kh:kh + h, kw:kw + w, :] for kh in range(KH) for kw in range(KW)],
        axis=-1).reshape(n * hw, k)
    # Append the constant-1 "bias" column and zero-pad K -> KPAD (lane-dense DMA;
    # VMEM pads to 128 lanes anyway, so this is free on-chip).
    patches_padded = jnp.concatenate(
        [patches,
         jnp.ones((n * hw, 1), jnp.float32),
         jnp.zeros((n * hw, KPAD - k - 1), jnp.float32)], axis=-1)

    kernel = functools.partial(_embed_kernel, n=n, hw=hw, cout=cout)

    bytes_accessed = (patches_padded.size + w_folded_padded.size + n * cout) * 4
    return pl.pallas_call(
        kernel,
        out_shape=jax.ShapeDtypeStruct((n, cout), jnp.float32),
        # No grid: whole arrays resident in VMEM, no pipeline bookkeeping,
        # no double-buffering of a single-iteration workload.
        in_specs=[
            pl.BlockSpec(memory_space=pltpu.MemorySpace.VMEM),
            pl.BlockSpec(memory_space=pltpu.MemorySpace.VMEM),
        ],
        out_specs=pl.BlockSpec(memory_space=pltpu.MemorySpace.VMEM),
        cost_estimate=pl.CostEstimate(
            flops=2 * n * hw * KPAD * cout,
            transcendentals=0,
            bytes_accessed=bytes_accessed),
    )(patches_padded, w_folded_padded)


# ---------------- deterministic synthetic parameters ----------------
def make_params():
    key = jax.random.PRNGKey(0)
    ks = jax.random.split(key, 8)
    # Conv2d(CIN, COUT, 3, padding=1): PyTorch weight is OIHW.
    w_oihw = jax.random.normal(ks[0], (COUT, CIN, KH, KW), jnp.float32) * 0.1
    w_hwio = jnp.transpose(w_oihw, (2, 3, 1, 0))
    b_conv = jax.random.normal(ks[1], (COUT,), jnp.float32) * 0.05
    bn_gamma = 1.0 + 0.1 * jax.random.normal(ks[2], (COUT,), jnp.float32)
    bn_beta = 0.1 * jax.random.normal(ks[3], (COUT,), jnp.float32)
    bn_mean = 0.1 * jax.random.normal(ks[4], (COUT,), jnp.float32)
    bn_var = jnp.abs(jax.random.normal(ks[5], (COUT,), jnp.float32)) + 0.5
    # fc (never applied; present so the 'fc' break is exercised)
    fc_w = jax.random.normal(ks[6], (COUT, FC_OUT), jnp.float32) * 0.1
    fc_b = jax.random.normal(ks[7], (FC_OUT,), jnp.float32) * 0.05
    return dict(w_hwio=w_hwio, b_conv=b_conv, bn_gamma=bn_gamma,
                bn_beta=bn_beta, bn_mean=bn_mean, bn_var=bn_var,
                fc_w=fc_w, fc_b=fc_b)


def fold_params(params, eps=1e-5):
    """Eval-mode BN + conv-bias fold, done ONCE at init (hoisted off the
    per-forward path).  Returns a (KPAD, COUT) weight slab whose row K is the
    folded shift and whose rows K+1.. are zero (matching the padded patches)."""
    scale = params["bn_gamma"] / jnp.sqrt(params["bn_var"] + eps)        # (cout,)
    w_folded = params["w_hwio"].reshape(K, COUT) * scale[None, :]        # (K, cout)
    shift = (params["b_conv"] * scale + params["bn_beta"]
             - params["bn_mean"] * scale).reshape(1, COUT)               # (1, cout)
    w_padded = jnp.concatenate(
        [w_folded, shift, jnp.zeros((KPAD - K - 1, COUT), jnp.float32)], axis=0)
    return jax.block_until_ready(w_padded)                               # (KPAD, cout)


# ---------------- ExtractEmbedding forward (mirrors the PyTorch loop) --------
@jax.jit
def extract_embedding(w_folded_padded, fc_w, fc_b, x_nchw):
    # model._modules: outer containers -> inner named submodules.
    model_modules = {
        "backbone": {
            # conv1 + bn1 + relu + gap fused into a single Pallas kernel.
            "conv_bn_relu_gap": lambda t: conv_bn_relu_gap(t, w_folded_padded),
        },
        "head": {
            "fc": lambda t: t @ fc_w + fc_b,
        },
    }
    x = x_nchw
    for _name, submodule in model_modules.items():
        for subname, submodel in submodule.items():
            if subname == "fc":          # same break-at-'fc' semantics
                break
            x = submodel(x)
    return x                             # (N, COUT) embedding


# ---------------- pure-JAX reference for correctness ----------------
def reference(params, x_nchw, eps=1e-5):
    x_nhwc = jnp.transpose(x_nchw, (0, 2, 3, 1))
    y = jax.lax.conv_general_dilated(
        x_nhwc, params["w_hwio"], (1, 1), "SAME",
        dimension_numbers=("NHWC", "HWIO", "NHWC")) + params["b_conv"]
    scale = params["bn_gamma"] / jnp.sqrt(params["bn_var"] + eps)
    y = (y - params["bn_mean"]) * scale + params["bn_beta"]
    y = jnp.maximum(y, 0.0)
    return jnp.mean(y, axis=(1, 2))      # (N, COUT)


if __name__ == "__main__":
    params = make_params()
    w_folded_padded = fold_params(params)        # one-time BN/bias fold
    x = jax.random.normal(jax.random.PRNGKey(0), (N, CIN, H, W), jnp.float32)

    emb = extract_embedding(w_folded_padded, params["fc_w"], params["fc_b"], x)
    emb = jax.block_until_ready(emb)

    ref = jax.block_until_ready(reference(params, x))
    assert emb.shape == (N, COUT), emb.shape
    # Note: jnp.dot uses TPU default (bf16-pass) matmul precision; K=36 is
    # small enough that 1e-4 holds across v5e/v6e/v7x.
    np.testing.assert_allclose(np.asarray(emb), np.asarray(ref),
                               rtol=1e-4, atol=1e-4)
    print("KERNEL_OK")
</pallas_src>

<mosaic_0001>
module attributes {stable_mosaic.version = 11 : i64} {
  func.func @_embed_kernel(%arg0: memref<512x128xf32, #tpu.memory_space<vmem>>, %arg1: memref<128x32xf32, #tpu.memory_space<vmem>>, %arg2: memref<2x32xf32, #tpu.memory_space<vmem>>) attributes {dimension_semantics = [], scalar_prefetch = 0 : i64, scratch_operands = 0 : i64, tpu.core_type = #tpu.core_type<tc>} {
    %c0 = arith.constant 0 : index
    %c0_0 = arith.constant 0 : index
    %0 = vector.load %arg0[%c0, %c0_0] : memref<512x128xf32, #tpu.memory_space<vmem>>, vector<512x128xf32>
    %c0_1 = arith.constant 0 : index
    %c0_2 = arith.constant 0 : index
    %1 = vector.load %arg1[%c0_1, %c0_2] : memref<128x32xf32, #tpu.memory_space<vmem>>, vector<128x32xf32>
    %cst = arith.constant dense<0.000000e+00> : vector<512x32xf32>
    %2 = tpu.matmul %0, %1, %cst {dimension_numbers = #tpu.dot_dimension_numbers<[1], [0], [0], [1], [0, 0, 1, 1], [], []>} : vector<512x128xf32>, vector<128x32xf32>, vector<512x32xf32> -> vector<512x32xf32>
    %cst_3 = arith.constant 0.000000e+00 : f32
    %3 = vector.broadcast %cst_3 : f32 to vector<512x32xf32>
    %4 = arith.maximumf %2, %3 : vector<512x32xf32>
    %5 = vector.shape_cast %4 : vector<512x32xf32> to vector<2x256x32xf32>
    %cst_4 = arith.constant dense<0.000000e+00> : vector<2x32xf32>
    %6 = vector.multi_reduction <add>, %5, %cst_4 [1] : vector<2x256x32xf32> to vector<2x32xf32>
    %cst_5 = arith.constant 3.906250e-03 : f32
    %7 = vector.broadcast %cst_5 : f32 to vector<2x32xf32>
    %8 = arith.mulf %6, %7 : vector<2x32xf32>
    %c0_6 = arith.constant 0 : index
    %c0_7 = arith.constant 0 : index
    %9 = vector.load %arg2[%c0_6, %c0_7] : memref<2x32xf32, #tpu.memory_space<vmem>>, vector<2x32xf32>
    tpu.vector_store %arg2[%c0_6, %c0_7], %8 {strides = array<i32>} : memref<2x32xf32, #tpu.memory_space<vmem>>, vector<2x32xf32>,
    return
  }
}

</mosaic_0001>

<llo_original>
// kernel: extract_embedding.1
$region0: #{extract_embedding.1}
  #allocation0 [shape = 'u32[]', space=smem, size = 0x4, offset = 0x4, fixed_abs, tag = 'smem constant byte address 0x4 - core index']
  #allocation1 [shape = 'u32[144,128]{1,0:T(1,128)}', space=vmem, size = 0x12000, scoped, tag = 'internal scratch']
  %s0 = inlined_call_operand.vmem [shape: f32[512,128], index: 0, kind: input, shape index: {}]
  %s1 = inlined_call_operand.vmem [shape: f32[128,32], index: 1, kind: input, shape index: {}]
  %s2 = inlined_call_operand.hbm [shape: f32[2,32], index: 2, kind: output, shape index: {}]
  %s3 = sld [smem:[#allocation0]]
  $region18: #{extract_embedding.1} parent=0
    _
  %s5 = ssub.s32 1, %s3
  %s6 = scalar_select 0, %s5, %s3
  $region1: #{extract_embedding.1} parent=0
    #allocation2 [shape = 'u8[1024]{0}', space=vmem, size = 0x400, scoped, tag = 'output window, operand 0, single buffered']
    #allocation3 [shape = 's32[1]{0}', space=sflag, size = 0x4, scoped, tag = 'scoped memory for extract_embedding.1']
    %7 = vsyncpa [#allocation3], 0
    // Predicated region
    $region2: #{extract_embedding.1} parent=1 // pred_check
      _
    $region3: #{extract_embedding.1} parent=1 // pred_check_branch
      %9 = sbr.rel (0) target = $region5
    $region4: #{extract_embedding.1} parent=1 // pred_region
      _
    $region5: #{extract_embedding.1} parent=1 // pred_fallthru
      _
    // Predicated region
    $region6: #{extract_embedding.1} parent=1 // pred_check
      _
    $region7: #{extract_embedding.1} parent=1 // pred_check_branch
      %11 = sbr.rel (0) target = $region9
    $region8: #{extract_embedding.1} parent=1 // pred_region
      _
    $region9: #{extract_embedding.1} parent=1 // pred_fallthru
      _
    %v12 = vld [vmem:[%s0] sm:$0xff]
    %v13 = vld [vmem:[%s0 + $0x8] sm:$0xff]
    %v14 = vld [vmem:[%s0 + $0x10] sm:$0xff]
    %v15 = vld [vmem:[%s0 + $0x18] sm:$0xff]
    %v16 = vld [vmem:[%s0 + $0x20] sm:$0xff]
    %v17 = vld [vmem:[%s0 + $0x28] sm:$0xff]
    %v18 = vld [vmem:[%s0 + $0x30] sm:$0xff]
    %v19 = vld [vmem:[%s0 + $0x38] sm:$0xff]
    %v20 = vld [vmem:[%s0 + $0x40] sm:$0xff]
    %v21 = vld [vmem:[%s0 + $0x48] sm:$0xff]
    %v22 = vld [vmem:[%s0 + $0x50] sm:$0xff]
    %v23 = vld [vmem:[%s0 + $0x58] sm:$0xff]
    %v24 = vld [vmem:[%s0 + $0x60] sm:$0xff]
    %v25 = vld [vmem:[%s0 + $0x68] sm:$0xff]
    %v26 = vld [vmem:[%s0 + $0x70] sm:$0xff]
    %v27 = vld [vmem:[%s0 + $0x78] sm:$0xff]
    %v28 = vld [vmem:[%s0 + $0x80] sm:$0xff]
    %v29 = vld [vmem:[%s0 + $0x88] sm:$0xff]
    %v30 = vld [vmem:[%s0 + $0x90] sm:$0xff]
    %v31 = vld [vmem:[%s0 + $0x98] sm:$0xff]
    %v32 = vld [vmem:[%s0 + $0xa0] sm:$0xff]
    %v33 = vld [vmem:[%s0 + $0xa8] sm:$0xff]
    %v34 = vld [vmem:[%s0 + $0xb0] sm:$0xff]
    %v35 = vld [vmem:[%s0 + $0xb8] sm:$0xff]
    %v36 = vld [vmem:[%s0 + $0xc0] sm:$0xff]
    %v37 = vld [vmem:[%s0 + $0xc8] sm:$0xff]
    %v38 = vld [vmem:[%s0 + $0xd0] sm:$0xff]
    %v39 = vld [vmem:[%s0 + $0xd8] sm:$0xff]
    %v40 = vld [vmem:[%s0 + $0xe0] sm:$0xff]
    %v41 = vld [vmem:[%s0 + $0xe8] sm:$0xff]
    %v42 = vld [vmem:[%s0 + $0xf0] sm:$0xff]
    %v43 = vld [vmem:[%s0 + $0xf8] sm:$0xff]
    %v44 = vld [vmem:[%s0 + $0x100] sm:$0xff]
    %v45 = vld [vmem:[%s0 + $0x108] sm:$0xff]
    %v46 = vld [vmem:[%s0 + $0x110] sm:$0xff]
    %v47 = vld [vmem:[%s0 + $0x118] sm:$0xff]
    %v48 = vld [vmem:[%s0 + $0x120] sm:$0xff]
    %v49 = vld [vmem:[%s0 + $0x128] sm:$0xff]
    %v50 = vld [vmem:[%s0 + $0x130] sm:$0xff]
    %v51 = vld [vmem:[%s0 + $0x138] sm:$0xff]
    %v52 = vld [vmem:[%s0 + $0x140] sm:$0xff]
    %v53 = vld [vmem:[%s0 + $0x148] sm:$0xff]
    %v54 = vld [vmem:[%s0 + $0x150] sm:$0xff]
    %v55 = vld [vmem:[%s0 + $0x158] sm:$0xff]
    %v56 = vld [vmem:[%s0 + $0x160] sm:$0xff]
    %v57 = vld [vmem:[%s0 + $0x168] sm:$0xff]
    %v58 = vld [vmem:[%s0 + $0x170] sm:$0xff]
    %v59 = vld [vmem:[%s0 + $0x178] sm:$0xff]
    %v60 = vld [vmem:[%s0 + $0x180] sm:$0xff]
    %v61 = vld [vmem:[%s0 + $0x188] sm:$0xff]
    %v62 = vld [vmem:[%s0 + $0x190] sm:$0xff]
    %v63 = vld [vmem:[%s0 + $0x198] sm:$0xff]
    %v64 = vld [vmem:[%s0 + $0x1a0] sm:$0xff]
    %v65 = vld [vmem:[%s0 + $0x1a8] sm:$0xff]
    %v66 = vld [vmem:[%s0 + $0x1b0] sm:$0xff]
    %v67 = vld [vmem:[%s0 + $0x1b8] sm:$0xff]
    %v68 = vld [vmem:[%s0 + $0x1c0] sm:$0xff]
    %v69 = vld [vmem:[%s0 + $0x1c8] sm:$0xff]
    %v70 = vld [vmem:[%s0 + $0x1d0] sm:$0xff]
    %v71 = vld [vmem:[%s0 + $0x1d8] sm:$0xff]
    %v72 = vld [vmem:[%s0 + $0x1e0] sm:$0xff]
    %v73 = vld [vmem:[%s0 + $0x1e8] sm:$0xff]
    %v74 = vld [vmem:[%s0 + $0x1f0] sm:$0xff]
    %v75 = vld [vmem:[%s0 + $0x1f8] sm:$0xff]
    %v76 = vld [vmem:[%s1] sm:$0xff]
    %v77 = vld [vmem:[%s1 + $0x8] sm:$0xff]
    %v78 = vld [vmem:[%s1 + $0x10] sm:$0xff]
    %v79 = vld [vmem:[%s1 + $0x18] sm:$0xff]
    %v80 = vld [vmem:[%s1 + $0x20] sm:$0xff]
    %v81 = vld [vmem:[%s1 + $0x28] sm:$0xff]
    %v82 = vld [vmem:[%s1 + $0x30] sm:$0xff]
    %v83 = vld [vmem:[%s1 + $0x38] sm:$0xff]
    %v84 = vld [vmem:[%s1 + $0x40] sm:$0xff]
    %v85 = vld [vmem:[%s1 + $0x48] sm:$0xff]
    %v86 = vld [vmem:[%s1 + $0x50] sm:$0xff]
    %v87 = vld [vmem:[%s1 + $0x58] sm:$0xff]
    %v88 = vld [vmem:[%s1 + $0x60] sm:$0xff]
    %v89 = vld [vmem:[%s1 + $0x68] sm:$0xff]
    %v90 = vld [vmem:[%s1 + $0x70] sm:$0xff]
    %v91 = vld [vmem:[%s1 + $0x78] sm:$0xff]
    %92 = vmatprep.subr.mxu0 0.0
    %93 = vmatpush1.msra.mxu0 %v76
    %94 = vmatprep.subr.mxu0 0.0
    %95 = vmatpush1.msra.mxu0 %v77
    %96 = vmatprep.subr.mxu0 0.0
    %97 = vmatpush1.msra.mxu0 %v78
    %98 = vmatprep.subr.mxu0 0.0
    %99 = vmatpush1.msra.mxu0 %v79
    %100 = vmatprep.subr.mxu0 0.0
    %101 = vmatpush1.msra.mxu0 %v80
    %102 = vmatprep.subr.mxu0 0.0
    %103 = vmatpush1.msra.mxu0 %v81
    %104 = vmatprep.subr.mxu0 0.0
    %105 = vmatpush1.msra.mxu0 %v82
    %106 = vmatprep.subr.mxu0 0.0
    %107 = vmatpush1.msra.mxu0 %v83
    %108 = vmatprep.subr.mxu0 0.0
    %109 = vmatpush1.msra.mxu0 %v84
    %110 = vmatprep.subr.mxu0 0.0
    %111 = vmatpush1.msra.mxu0 %v85
    %112 = vmatprep.subr.mxu0 0.0
    %113 = vmatpush1.msra.mxu0 %v86
    %114 = vmatprep.subr.mxu0 0.0
    %115 = vmatpush1.msra.mxu0 %v87
    %116 = vmatprep.subr.mxu0 0.0
    %117 = vmatpush1.msra.mxu0 %v88
    %118 = vmatprep.subr.mxu0 0.0
    %119 = vmatpush1.msra.mxu0 %v89
    %120 = vmatprep.subr.mxu0 0.0
    %121 = vmatpush1.msra.mxu0 %v90
    %122 = vmatprep.subr.mxu0 0.0
    %123 = vmatpush1.msra.mxu0 %v91
    %124 = vmatprep.subr.mxu0 0.0
    %125 = vmatpush1.msra.mxu0 0.0
    %126 = vmatprep.subr.mxu0 0.0
    %127 = vmatpush1.msra.mxu0 0.0
    %128 = vmatprep.subr.mxu0 0.0
    %129 = vmatpush1.msra.mxu0 0.0
    %130 = vmatprep.subr.mxu0 0.0
    %131 = vmatpush1.msra.mxu0 0.0
    %132 = vmatprep.subr.mxu0 0.0
    %133 = vmatpush1.msra.mxu0 0.0
    %134 = vmatprep.subr.mxu0 0.0
    %135 = vmatpush1.msra.mxu0 0.0
    %136 = vmatprep.subr.mxu0 0.0
    %137 = vmatpush1.msra.mxu0 0.0
    %138 = vmatprep.subr.mxu0 0.0
    %139 = vmatpush1.msra.mxu0 0.0
    %140 = vmatprep.subr.mxu0 0.0
    %141 = vmatpush1.msra.mxu0 0.0
    %142 = vmatprep.subr.mxu0 0.0
    %143 = vmatpush1.msra.mxu0 0.0
    %144 = vmatprep.subr.mxu0 0.0
    %145 = vmatpush1.msra.mxu0 0.0
    %146 = vmatprep.subr.mxu0 0.0
    %147 = vmatpush1.msra.mxu0 0.0
    %148 = vmatprep.subr.mxu0 0.0
    %149 = vmatpush1.msra.mxu0 0.0
    %150 = vmatprep.subr.mxu0 0.0
    %151 = vmatpush1.msra.mxu0 0.0
    %152 = vmatprep.subr.mxu0 0.0
    %153 = vmatpush1.msra.mxu0 0.0
    %154 = vmatprep.subr.mxu0 0.0
    %155 = vmatpush1.msra.mxu0 0.0
    %156 = vmatprep.mubr.f32.mxu0 0.0
    %157 = vmatmul.mubr.f32.gmra.mrb[0].mxu0 %v12
    %v158 = vpop.f32.mrb[0].mxu0
    %v159 = vadd.f32 0.0, %v158
    %v160 = vpop.f32.mrb[0].mxu0
    %161 = vmatprep.mubr.f32.mxu0 0.0
    %162 = vmatmul.mubr.f32.gmra.mrb[0].mxu0 %v13
    %v163 = vpop.f32.mrb[0].mxu0
    %v164 = vadd.f32 0.0, %v163
    %v165 = vpop.f32.mrb[0].mxu0
    %166 = vmatprep.mubr.f32.mxu0 0.0
    %167 = vmatmul.mubr.f32.gmra.mrb[0].mxu0 %v14
    %v168 = vpop.f32.mrb[0].mxu0
    %v169 = vadd.f32 0.0, %v168
    %v170 = vpop.f32.mrb[0].mxu0
    %171 = vmatprep.mubr.f32.mxu0 0.0
    %172 = vmatmul.mubr.f32.gmra.mrb[0].mxu0 %v15
    %v173 = vpop.f32.mrb[0].mxu0
    %v174 = vadd.f32 0.0, %v173
    %v175 = vpop.f32.mrb[0].mxu0
    %176 = vmatprep.mubr.f32.mxu0 0.0
    %177 = vmatmul.mubr.f32.gmra.mrb[0].mxu0 %v16
    %v178 = vpop.f32.mrb[0].mxu0
    %v179 = vadd.f32 0.0, %v178
    %v180 = vpop.f32.mrb[0].mxu0
    %181 = vmatprep.mubr.f32.mxu0 0.0
    %182 = vmatmul.mubr.f32.gmra.mrb[0].mxu0 %v17
    %v183 = vpop.f32.mrb[0].mxu0
    %v184 = vadd.f32 0.0, %v183
    %v185 = vpop.f32.mrb[0].mxu0
    %186 = vmatprep.mubr.f32.mxu0 0.0
    %187 = vmatmul.mubr.f32.gmra.mrb[0].mxu0 %v18
    %v188 = vpop.f32.mrb[0].mxu0
    %v189 = vadd.f32 0.0, %v188
    %v190 = vpop.f32.mrb[0].mxu0
    %191 = vmatprep.mubr.f32.mxu0 0.0
    %192 = vmatmul.mubr.f32.gmra.mrb[0].mxu0 %v19
    %v193 = vpop.f32.mrb[0].mxu0
    %v194 = vadd.f32 0.0, %v193
    %v195 = vpop.f32.mrb[0].mxu0
    %196 = vmatprep.mubr.f32.mxu0 0.0
    %197 = vmatmul.mubr.f32.gmra.mrb[0].mxu0 %v20
    %v198 = vpop.f32.mrb[0].mxu0
    %v199 = vadd.f32 0.0, %v198
    %v200 = vpop.f32.mrb[0].mxu0
    %201 = vmatprep.mubr.f32.mxu0 0.0
    %202 = vmatmul.mubr.f32.gmra.mrb[0].mxu0 %v21
    %v203 = vpop.f32.mrb[0].mxu0
    %v204 = vadd.f32 0.0, %v203
    %v205 = vpop.f32.mrb[0].mxu0
    %206 = vmatprep.mubr.f32.mxu0 0.0
    %207 = vmatmul.mubr.f32.gmra.mrb[0].mxu0 %v22
    %v208 = vpop.f32.mrb[0].mxu0
    %v209 = vadd.f32 0.0, %v208
    %v210 = vpop.f32.mrb[0].mxu0
    %211 = vmatprep.mubr.f32.mxu0 0.0
    %212 = vmatmul.mubr.f32.gmra.mrb[0].mxu0 %v23
    %v213 = vpop.f32.mrb[0].mxu0
    %v214 = vadd.f32 0.0, %v213
    %v215 = vpop.f32.mrb[0].mxu0
    %216 = vmatprep.mubr.f32.mxu0 0.0
    %217 = vmatmul.mubr.f32.gmra.mrb[0].mxu0 %v24
    %v218 = vpop.f32.mrb[0].mxu0
    %v219 = vadd.f32 0.0, %v218
    %v220 = vpop.f32.mrb[0].mxu0
    %221 = vmatprep.mubr.f32.mxu0 0.0
    %222 = vmatmul.mubr.f32.gmra.mrb[0].mxu0 %v25
    %v223 = vpop.f32.mrb[0].mxu0
    %v224 = vadd.f32 0.0, %v223
    %v225 = vpop.f32.mrb[0].mxu0
    %226 = vmatprep.mubr.f32.mxu0 0.0
    %227 = vmatmul.mubr.f32.gmra.mrb[0].mxu0 %v26
    %v228 = vpop.f32.mrb[0].mxu0
    %v229 = vadd.f32 0.0, %v228
    %v230 = vpop.f32.mrb[0].mxu0
    %231 = vmatprep.mubr.f32.mxu0 0.0
    %232 = vmatmul.mubr.f32.gmra.mrb[0].mxu0 %v27
    %v233 = vpop.f32.mrb[0].mxu0
    %v234 = vadd.f32 0.0, %v233
    %v235 = vpop.f32.mrb[0].mxu0
    %236 = vmatprep.mubr.f32.mxu0 0.0
    %237 = vmatmul.mubr.f32.gmra.mrb[0].mxu0 %v28
    %v238 = vpop.f32.mrb[0].mxu0
    %v239 = vadd.f32 0.0, %v238
    %v240 = vpop.f32.mrb[0].mxu0
    %241 = vmatprep.mubr.f32.mxu0 0.0
    %242 = vmatmul.mubr.f32.gmra.mrb[0].mxu0 %v29
    %v243 = vpop.f32.mrb[0].mxu0
    %v244 = vadd.f32 0.0, %v243
    %v245 = vpop.f32.mrb[0].mxu0
    %246 = vmatprep.mubr.f32.mxu0 0.0
    %247 = vmatmul.mubr.f32.gmra.mrb[0].mxu0 %v30
    %v248 = vpop.f32.mrb[0].mxu0
    %v249 = vadd.f32 0.0, %v248
    %v250 = vpop.f32.mrb[0].mxu0
    %251 = vmatprep.mubr.f32.mxu0 0.0
    %252 = vmatmul.mubr.f32.gmra.mrb[0].mxu0 %v31
    %v253 = vpop.f32.mrb[0].mxu0
    %v254 = vadd.f32 0.0, %v253
    %v255 = vpop.f32.mrb[0].mxu0
    %256 = vmatprep.mubr.f32.mxu0 0.0
    %257 = vmatmul.mubr.f32.gmra.mrb[0].mxu0 %v32
    %v258 = vpop.f32.mrb[0].mxu0
    %v259 = vadd.f32 0.0, %v258
    %v260 = vpop.f32.mrb[0].mxu0
    %261 = vmatprep.mubr.f32.mxu0 0.0
    %262 = vmatmul.mubr.f32.gmra.mrb[0].mxu0 %v33
    %v263 = vpop.f32.mrb[0].mxu0
    %v264 = vadd.f32 0.0, %v263
    %v265 = vpop.f32.mrb[0].mxu0
    %266 = vmatprep.mubr.f32.mxu0 0.0
    %267 = vmatmul.mubr.f32.gmra.mrb[0].mxu0 %v34
    %v268 = vpop.f32.mrb[0].mxu0
    %v269 = vadd.f32 0.0, %v268
    %v270 = vpop.f32.mrb[0].mxu0
    %271 = vmatprep.mubr.f32.mxu0 0.0
    %272 = vmatmul.mubr.f32.gmra.mrb[0].mxu0 %v35
    %v273 = vpop.f32.mrb[0].mxu0
    %v274 = vadd.f32 0.0, %v273
    %v275 = vpop.f32.mrb[0].mxu0
    %276 = vmatprep.mubr.f32.mxu0 0.0
    %277 = vmatmul.mubr.f32.gmra.mrb[0].mxu0 %v36
    %v278 = vpop.f32.mrb[0].mxu0
    %v279 = vadd.f32 0.0, %v278
    %v280 = vpop.f32.mrb[0].mxu0
    %281 = vmatprep.mubr.f32.mxu0 0.0
    %282 = vmatmul.mubr.f32.gmra.mrb[0].mxu0 %v37
    %v283 = vpop.f32.mrb[0].mxu0
    %v284 = vadd.f32 0.0, %v283
    %v285 = vpop.f32.mrb[0].mxu0
    %286 = vmatprep.mubr.f32.mxu0 0.0
    %287 = vmatmul.mubr.f32.gmra.mrb[0].mxu0 %v38
    %v288 = vpop.f32.mrb[0].mxu0
    %v289 = vadd.f32 0.0, %v288
    %v290 = vpop.f32.mrb[0].mxu0
    %291 = vmatprep.mubr.f32.mxu0 0.0
    %292 = vmatmul.mubr.f32.gmra.mrb[0].mxu0 %v39
    %v293 = vpop.f32.mrb[0].mxu0
    %v294 = vadd.f32 0.0, %v293
    %v295 = vpop.f32.mrb[0].mxu0
    %296 = vmatprep.mubr.f32.mxu0 0.0
    %297 = vmatmul.mubr.f32.gmra.mrb[0].mxu0 %v40
    %v298 = vpop.f32.mrb[0].mxu0
    %v299 = vadd.f32 0.0, %v298
    %v300 = vpop.f32.mrb[0].mxu0
    %301 = vmatprep.mubr.f32.mxu0 0.0
    %302 = vmatmul.mubr.f32.gmra.mrb[0].mxu0 %v41
    %v303 = vpop.f32.mrb[0].mxu0
    %v304 = vadd.f32 0.0, %v303
    %v305 = vpop.f32.mrb[0].mxu0
    %306 = vmatprep.mubr.f32.mxu0 0.0
    %307 = vmatmul.mubr.f32.gmra.mrb[0].mxu0 %v42
    %v308 = vpop.f32.mrb[0].mxu0
    %v309 = vadd.f32 0.0, %v308
    %v310 = vpop.f32.mrb[0].mxu0
    %311 = vmatprep.mubr.f32.mxu0 0.0
    %312 = vmatmul.mubr.f32.gmra.mrb[0].mxu0 %v43
    %v313 = vpop.f32.mrb[0].mxu0
    %v314 = vadd.f32 0.0, %v313
    %v315 = vpop.f32.mrb[0].mxu0
    %316 = vmatprep.mubr.f32.mxu0 0.0
    %317 = vmatmul.mubr.f32.gmra.mrb[0].mxu0 %v44
    %v318 = vpop.f32.mrb[0].mxu0
    %v319 = vadd.f32 0.0, %v318
    %v320 = vpop.f32.mrb[0].mxu0
    %321 = vmatprep.mubr.f32.mxu0 0.0
    %322 = vmatmul.mubr.f32.gmra.mrb[0].mxu0 %v45
    %v323 = vpop.f32.mrb[0].mxu0
    %v324 = vadd.f32 0.0, %v323
    %v325 = vpop.f32.mrb[0].mxu0
    %326 = vmatprep.mubr.f32.mxu0 0.0
    %327 = vmatmul.mubr.f32.gmra.mrb[0].mxu0 %v46
    %v328 = vpop.f32.mrb[0].mxu0
    %v329 = vadd.f32 0.0, %v328
    %v330 = vpop.f32.mrb[0].mxu0
    %331 = vmatprep.mubr.f32.mxu0 0.0
    %332 = vmatmul.mubr.f32.gmra.mrb[0].mxu0 %v47
    %v333 = vpop.f32.mrb[0].mxu0
    %v334 = vadd.f32 0.0, %v333
    %v335 = vpop.f32.mrb[0].mxu0
    %336 = vmatprep.mubr.f32.mxu0 0.0
    %337 = vmatmul.mubr.f32.gmra.mrb[0].mxu0 %v48
    %v338 = vpop.f32.mrb[0].mxu0
    %v339 = vadd.f32 0.0, %v338
    %v340 = vpop.f32.mrb[0].mxu0
    %341 = vmatprep.mubr.f32.mxu0 0.0
    %342 = vmatmul.mubr.f32.gmra.mrb[0].mxu0 %v49
    %v343 = vpop.f32.mrb[0].mxu0
    %v344 = vadd.f32 0.0, %v343
    %v345 = vpop.f32.mrb[0].mxu0
    %346 = vmatprep.mubr.f32.mxu0 0.0
    %347 = vmatmul.mubr.f32.gmra.mrb[0].mxu0 %v50
    %v348 = vpop.f32.mrb[0].mxu0
    %v349 = vadd.f32 0.0, %v348
    %v350 = vpop.f32.mrb[0].mxu0
    %351 = vmatprep.mubr.f32.mxu0 0.0
    %352 = vmatmul.mubr.f32.gmra.mrb[0].mxu0 %v51
    %v353 = vpop.f32.mrb[0].mxu0
    %v354 = vadd.f32 0.0, %v353
    %v355 = vpop.f32.mrb[0].mxu0
    %356 = vmatprep.mubr.f32.mxu0 0.0
    %357 = vmatmul.mubr.f32.gmra.mrb[0].mxu0 %v52
    %v358 = vpop.f32.mrb[0].mxu0
    %v359 = vadd.f32 0.0, %v358
    %v360 = vpop.f32.mrb[0].mxu0
    %361 = vmatprep.mubr.f32.mxu0 0.0
    %362 = vmatmul.mubr.f32.gmra.mrb[0].mxu0 %v53
    %v363 = vpop.f32.mrb[0].mxu0
    %v364 = vadd.f32 0.0, %v363
    %v365 = vpop.f32.mrb[0].mxu0
    %366 = vmatprep.mubr.f32.mxu0 0.0
    %367 = vmatmul.mubr.f32.gmra.mrb[0].mxu0 %v54
    %v368 = vpop.f32.mrb[0].mxu0
    %v369 = vadd.f32 0.0, %v368
    %v370 = vpop.f32.mrb[0].mxu0
    %371 = vmatprep.mubr.f32.mxu0 0.0
    %372 = vmatmul.mubr.f32.gmra.mrb[0].mxu0 %v55
    %v373 = vpop.f32.mrb[0].mxu0
    %v374 = vadd.f32 0.0, %v373
    %v375 = vpop.f32.mrb[0].mxu0
    %376 = vmatprep.mubr.f32.mxu0 0.0
    %377 = vmatmul.mubr.f32.gmra.mrb[0].mxu0 %v56
    %v378 = vpop.f32.mrb[0].mxu0
    %v379 = vadd.f32 0.0, %v378
    %v380 = vpop.f32.mrb[0].mxu0
    %381 = vmatprep.mubr.f32.mxu0 0.0
    %382 = vmatmul.mubr.f32.gmra.mrb[0].mxu0 %v57
    %v383 = vpop.f32.mrb[0].mxu0
    %v384 = vadd.f32 0.0, %v383
    %v385 = vpop.f32.mrb[0].mxu0
    %386 = vmatprep.mubr.f32.mxu0 0.0
    %387 = vmatmul.mubr.f32.gmra.mrb[0].mxu0 %v58
    %v388 = vpop.f32.mrb[0].mxu0
    %v389 = vadd.f32 0.0, %v388
    %v390 = vpop.f32.mrb[0].mxu0
    %391 = vmatprep.mubr.f32.mxu0 0.0
    %392 = vmatmul.mubr.f32.gmra.mrb[0].mxu0 %v59
    %v393 = vpop.f32.mrb[0].mxu0
    %v394 = vadd.f32 0.0, %v393
    %v395 = vpop.f32.mrb[0].mxu0
    %396 = vmatprep.mubr.f32.mxu0 0.0
    %397 = vmatmul.mubr.f32.gmra.mrb[0].mxu0 %v60
    %v398 = vpop.f32.mrb[0].mxu0
    %v399 = vadd.f32 0.0, %v398
    %v400 = vpop.f32.mrb[0].mxu0
    %401 = vmatprep.mubr.f32.mxu0 0.0
    %402 = vmatmul.mubr.f32.gmra.mrb[0].mxu0 %v61
    %v403 = vpop.f32.mrb[0].mxu0
    %v404 = vadd.f32 0.0, %v403
    %v405 = vpop.f32.mrb[0].mxu0
    %406 = vmatprep.mubr.f32.mxu0 0.0
    %407 = vmatmul.mubr.f32.gmra.mrb[0].mxu0 %v62
    %v408 = vpop.f32.mrb[0].mxu0
    %v409 = vadd.f32 0.0, %v408
    %v410 = vpop.f32.mrb[0].mxu0
    %411 = vmatprep.mubr.f32.mxu0 0.0
    %412 = vmatmul.mubr.f32.gmra.mrb[0].mxu0 %v63
    %v413 = vpop.f32.mrb[0].mxu0
    %v414 = vadd.f32 0.0, %v413
    %v415 = vpop.f32.mrb[0].mxu0
    %416 = vmatprep.mubr.f32.mxu0 0.0
    %417 = vmatmul.mubr.f32.gmra.mrb[0].mxu0 %v64
    %v418 = vpop.f32.mrb[0].mxu0
    %v419 = vadd.f32 0.0, %v418
    %v420 = vpop.f32.mrb[0].mxu0
    %421 = vmatprep.mubr.f32.mxu0 0.0
    %422 = vmatmul.mubr.f32.gmra.mrb[0].mxu0 %v65
    %v423 = vpop.f32.mrb[0].mxu0
    %v424 = vadd.f32 0.0, %v423
    %v425 = vpop.f32.mrb[0].mxu0
    %426 = vmatprep.mubr.f32.mxu0 0.0
    %427 = vmatmul.mubr.f32.gmra.mrb[0].mxu0 %v66
    %v428 = vpop.f32.mrb[0].mxu0
    %v429 = vadd.f32 0.0, %v428
    %v430 = vpop.f32.mrb[0].mxu0
    %431 = vmatprep.mubr.f32.mxu0 0.0
    %432 = vmatmul.mubr.f32.gmra.mrb[0].mxu0 %v67
    %v433 = vpop.f32.mrb[0].mxu0
    %v434 = vadd.f32 0.0, %v433
    %v435 = vpop.f32.mrb[0].mxu0
    %436 = vmatprep.mubr.f32.mxu0 0.0
    %437 = vmatmul.mubr.f32.gmra.mrb[0].mxu0 %v68
    %v438 = vpop.f32.mrb[0].mxu0
    %v439 = vadd.f32 0.0, %v438
    %v440 = vpop.f32.mrb[0].mxu0
    %441 = vmatprep.mubr.f32.mxu0 0.0
    %442 = vmatmul.mubr.f32.gmra.mrb[0].mxu0 %v69
    %v443 = vpop.f32.mrb[0].mxu0
    %v444 = vadd.f32 0.0, %v443
    %v445 = vpop.f32.mrb[0].mxu0
    %446 = vmatprep.mubr.f32.mxu0 0.0
    %447 = vmatmul.mubr.f32.gmra.mrb[0].mxu0 %v70
    %v448 = vpop.f32.mrb[0].mxu0
    %v449 = vadd.f32 0.0, %v448
    %v450 = vpop.f32.mrb[0].mxu0
    %451 = vmatprep.mubr.f32.mxu0 0.0
    %452 = vmatmul.mubr.f32.gmra.mrb[0].mxu0 %v71
    %v453 = vpop.f32.mrb[0].mxu0
    %v454 = vadd.f32 0.0, %v453
    %v455 = vpop.f32.mrb[0].mxu0
    %456 = vmatprep.mubr.f32.mxu0 0.0
    %457 = vmatmul.mubr.f32.gmra.mrb[0].mxu0 %v72
    %v458 = vpop.f32.mrb[0].mxu0
    %v459 = vadd.f32 0.0, %v458
    %v460 = vpop.f32.mrb[0].mxu0
    %461 = vmatprep.mubr.f32.mxu0 0.0
    %462 = vmatmul.mubr.f32.gmra.mrb[0].mxu0 %v73
    %v463 = vpop.f32.mrb[0].mxu0
    %v464 = vadd.f32 0.0, %v463
    %v465 = vpop.f32.mrb[0].mxu0
    %466 = vmatprep.mubr.f32.mxu0 0.0
    %467 = vmatmul.mubr.f32.gmra.mrb[0].mxu0 %v74
    %v468 = vpop.f32.mrb[0].mxu0
    %v469 = vadd.f32 0.0, %v468
    %v470 = vpop.f32.mrb[0].mxu0
    %471 = vmatprep.mubr.f32.mxu0 0.0
    %472 = vmatmul.mubr.f32.gmra.mrb[0].mxu0 %v75
    %v473 = vpop.f32.mrb[0].mxu0
    %v474 = vadd.f32 0.0, %v473
    %v475 = vpop.f32.mrb[0].mxu0
    %476 = vdwg.mxu0
    %v477 = vmax.f32 %v159, 0.0
    %v478 = vmax.f32 %v164, 0.0
    %v479 = vmax.f32 %v169, 0.0
    %v480 = vmax.f32 %v174, 0.0
    %v481 = vmax.f32 %v179, 0.0
    %v482 = vmax.f32 %v184, 0.0
    %v483 = vmax.f32 %v189, 0.0
    %v484 = vmax.f32 %v194, 0.0
    %v485 = vmax.f32 %v199, 0.0
    %v486 = vmax.f32 %v204, 0.0
    %v487 = vmax.f32 %v209, 0.0
    %v488 = vmax.f32 %v214, 0.0
    %v489 = vmax.f32 %v219, 0.0
    %v490 = vmax.f32 %v224, 0.0
    %v491 = vmax.f32 %v229, 0.0
    %v492 = vmax.f32 %v234, 0.0
    %v493 = vmax.f32 %v239, 0.0
    %v494 = vmax.f32 %v244, 0.0
    %v495 = vmax.f32 %v249, 0.0
    %v496 = vmax.f32 %v254, 0.0
    %v497 = vmax.f32 %v259, 0.0
    %v498 = vmax.f32 %v264, 0.0
    %v499 = vmax.f32 %v269, 0.0
    %v500 = vmax.f32 %v274, 0.0
    %v501 = vmax.f32 %v279, 0.0
    %v502 = vmax.f32 %v284, 0.0
    %v503 = vmax.f32 %v289, 0.0
    %v504 = vmax.f32 %v294, 0.0
    %v505 = vmax.f32 %v299, 0.0
    %v506 = vmax.f32 %v304, 0.0
    %v507 = vmax.f32 %v309, 0.0
    %v508 = vmax.f32 %v314, 0.0
    %v509 = vmax.f32 %v319, 0.0
    %v510 = vmax.f32 %v324, 0.0
    %v511 = vmax.f32 %v329, 0.0
    %v512 = vmax.f32 %v334, 0.0
    %v513 = vmax.f32 %v339, 0.0
    %v514 = vmax.f32 %v344, 0.0
    %v515 = vmax.f32 %v349, 0.0
    %v516 = vmax.f32 %v354, 0.0
    %v517 = vmax.f32 %v359, 0.0
    %v518 = vmax.f32 %v364, 0.0
    %v519 = vmax.f32 %v369, 0.0
    %v520 = vmax.f32 %v374, 0.0
    %v521 = vmax.f32 %v379, 0.0
    %v522 = vmax.f32 %v384, 0.0
    %v523 = vmax.f32 %v389, 0.0
    %v524 = vmax.f32 %v394, 0.0
    %v525 = vmax.f32 %v399, 0.0
    %v526 = vmax.f32 %v404, 0.0
    %v527 = vmax.f32 %v409, 0.0
    %v528 = vmax.f32 %v414, 0.0
    %v529 = vmax.f32 %v419, 0.0
    %v530 = vmax.f32 %v424, 0.0
    %v531 = vmax.f32 %v429, 0.0
    %v532 = vmax.f32 %v434, 0.0
    %v533 = vmax.f32 %v439, 0.0
    %v534 = vmax.f32 %v444, 0.0
    %v535 = vmax.f32 %v449, 0.0
    %v536 = vmax.f32 %v454, 0.0
    %v537 = vmax.f32 %v459, 0.0
    %v538 = vmax.f32 %v464, 0.0
    %v539 = vmax.f32 %v469, 0.0
    %v540 = vmax.f32 %v474, 0.0
    %vm541 = vcmask 261120
    %v542 = vsel %vm541, %v477, 0.0
    %v543 = vsel %vm541, %v478, 0.0
    %v544 = vadd.f32 %v542, %v543
    %v545 = vsel %vm541, %v479, 0.0
    %v546 = vadd.f32 %v544, %v545
    %v547 = vsel %vm541, %v480, 0.0
    %v548 = vadd.f32 %v546, %v547
    %v549 = vsel %vm541, %v481, 0.0
    %v550 = vadd.f32 %v548, %v549
    %v551 = vsel %vm541, %v482, 0.0
    %v552 = vadd.f32 %v550, %v551
    %v553 = vsel %vm541, %v483, 0.0
    %v554 = vadd.f32 %v552, %v553
    %v555 = vsel %vm541, %v484, 0.0
    %v556 = vadd.f32 %v554, %v555
    %v557 = vsel %vm541, %v485, 0.0
    %v558 = vadd.f32 %v556, %v557
    %v559 = vsel %vm541, %v486, 0.0
    %v560 = vadd.f32 %v558, %v559
    %v561 = vsel %vm541, %v487, 0.0
    %v562 = vadd.f32 %v560, %v561
    %v563 = vsel %vm541, %v488, 0.0
    %v564 = vadd.f32 %v562, %v563
    %v565 = vsel %vm541, %v489, 0.0
    %v566 = vadd.f32 %v564, %v565
    %v567 = vsel %vm541, %v490, 0.0
    %v568 = vadd.f32 %v566, %v567
    %v569 = vsel %vm541, %v491, 0.0
    %v570 = vadd.f32 %v568, %v569
    %v571 = vsel %vm541, %v492, 0.0
    %v572 = vadd.f32 %v570, %v571
    %v573 = vsel %vm541, %v493, 0.0
    %v574 = vadd.f32 %v572, %v573
    %v575 = vsel %vm541, %v494, 0.0
    %v576 = vadd.f32 %v574, %v575
    %v577 = vsel %vm541, %v495, 0.0
    %v578 = vadd.f32 %v576, %v577
    %v579 = vsel %vm541, %v496, 0.0
    %v580 = vadd.f32 %v578, %v579
    %v581 = vsel %vm541, %v497, 0.0
    %v582 = vadd.f32 %v580, %v581
    %v583 = vsel %vm541, %v498, 0.0
    %v584 = vadd.f32 %v582, %v583
    %v585 = vsel %vm541, %v499, 0.0
    %v586 = vadd.f32 %v584, %v585
    %v587 = vsel %vm541, %v500, 0.0
    %v588 = vadd.f32 %v586, %v587
    %v589 = vsel %vm541, %v501, 0.0
    %v590 = vadd.f32 %v588, %v589
    %v591 = vsel %vm541, %v502, 0.0
    %v592 = vadd.f32 %v590, %v591
    %v593 = vsel %vm541, %v503, 0.0
    %v594 = vadd.f32 %v592, %v593
    %v595 = vsel %vm541, %v504, 0.0
    %v596 = vadd.f32 %v594, %v595
    %v597 = vsel %vm541, %v505, 0.0
    %v598 = vadd.f32 %v596, %v597
    %v599 = vsel %vm541, %v506, 0.0
    %v600 = vadd.f32 %v598, %v599
    %v601 = vsel %vm541, %v507, 0.0
    %v602 = vadd.f32 %v600, %v601
    %v603 = vsel %vm541, %v508, 0.0
    %v604 = vadd.f32 %v602, %v603
    %v605 = vrot.slane %v604, 4
    %v606 = vadd.f32 %v604, %v605
    %v607 = vrot.slane %v606, 2
    %v608 = vadd.f32 %v606, %v607
    %v609 = vrot.slane %v608, 1
    %v610 = vadd.f32 %v608, %v609
    %v611 = vsel %vm541, %v509, 0.0
    %v612 = vsel %vm541, %v510, 0.0
    %v613 = vadd.f32 %v611, %v612
    %v614 = vsel %vm541, %v511, 0.0
    %v615 = vadd.f32 %v613, %v614
    %v616 = vsel %vm541, %v512, 0.0
    %v617 = vadd.f32 %v615, %v616
    %v618 = vsel %vm541, %v513, 0.0
    %v619 = vadd.f32 %v617, %v618
    %v620 = vsel %vm541, %v514, 0.0
    %v621 = vadd.f32 %v619, %v620
    %v622 = vsel %vm541, %v515, 0.0
    %v623 = vadd.f32 %v621, %v622
    %v624 = vsel %vm541, %v516, 0.0
    %v625 = vadd.f32 %v623, %v624
    %v626 = vsel %vm541, %v517, 0.0
    %v627 = vadd.f32 %v625, %v626
    %v628 = vsel %vm541, %v518, 0.0
    %v629 = vadd.f32 %v627, %v628
    %v630 = vsel %vm541, %v519, 0.0
    %v631 = vadd.f32 %v629, %v630
    %v632 = vsel %vm541, %v520, 0.0
    %v633 = vadd.f32 %v631, %v632
    %v634 = vsel %vm541, %v521, 0.0
    %v635 = vadd.f32 %v633, %v634
    %v636 = vsel %vm541, %v522, 0.0
    %v637 = vadd.f32 %v635, %v636
    %v638 = vsel %vm541, %v523, 0.0
    %v639 = vadd.f32 %v637, %v638
    %v640 = vsel %vm541, %v524, 0.0
    %v641 = vadd.f32 %v639, %v640
    %v642 = vsel %vm541, %v525, 0.0
    %v643 = vadd.f32 %v641, %v642
    %v644 = vsel %vm541, %v526, 0.0
    %v645 = vadd.f32 %v643, %v644
    %v646 = vsel %vm541, %v527, 0.0
    %v647 = vadd.f32 %v645, %v646
    %v648 = vsel %vm541, %v528, 0.0
    %v649 = vadd.f32 %v647, %v648
    %v650 = vsel %vm541, %v529, 0.0
    %v651 = vadd.f32 %v649, %v650
    %v652 = vsel %vm541, %v530, 0.0
    %v653 = vadd.f32 %v651, %v652
    %v654 = vsel %vm541, %v531, 0.0
    %v655 = vadd.f32 %v653, %v654
    %v656 = vsel %vm541, %v532, 0.0
    %v657 = vadd.f32 %v655, %v656
    %v658 = vsel %vm541, %v533, 0.0
    %v659 = vadd.f32 %v657, %v658
    %v660 = vsel %vm541, %v534, 0.0
    %v661 = vadd.f32 %v659, %v660
    %v662 = vsel %vm541, %v535, 0.0
    %v663 = vadd.f32 %v661, %v662
    %v664 = vsel %vm541, %v536, 0.0
    %v665 = vadd.f32 %v663, %v664
    %v666 = vsel %vm541, %v537, 0.0
    %v667 = vadd.f32 %v665, %v666
    %v668 = vsel %vm541, %v538, 0.0
    %v669 = vadd.f32 %v667, %v668
    %v670 = vsel %vm541, %v539, 0.0
    %v671 = vadd.f32 %v669, %v670
    %v672 = vsel %vm541, %v540, 0.0
    %v673 = vadd.f32 %v671, %v672
    %v674 = vrot.slane %v673, 4
    %v675 = vadd.f32 %v673, %v674
    %v676 = vrot.slane %v675, 2
    %v677 = vadd.f32 %v675, %v676
    %v678 = vrot.slane %v677, 1
    %v679 = vadd.f32 %v677, %v678
    %v680 = vmul.f32 %v610, 0.00390625
    %v681 = vmul.f32 %v679, 0.00390625
    %vm684 = vcmask 1041409
    %v685 = vsel %vm684, %v681, %v680
    %vm687 = vcmask 254976
    %688 = vst.msk [vmem:[#allocation2] sm:$0x3] %vm687, %v685
    // Predicated region
    $region10: #{extract_embedding.1} parent=1 // pred_check
      _
    $region11: #{extract_embedding.1} parent=1 // pred_check_branch
      %690 = sbr.rel (0) target = $region13
    $region12: #{extract_embedding.1} parent=1 // pred_region
      %s692 = ssub.s32 32, 32
      %693 = vsyncadd [#allocation3], %s692
      %s695 = sshll.u32 [#allocation2], 4
      %s696 = int_to_ptr.vmem [resolvable:$true] %s695
      %698 = dma.vmem_to_hbm [thread:$0]  %s696, 32, %s2, [#allocation3]
    $region13: #{extract_embedding.1} parent=1 // pred_fallthru
      _
    // Predicated region
    $region14: #{extract_embedding.1} parent=1 // pred_check
      _
    $region15: #{extract_embedding.1} parent=1 // pred_check_branch
      %700 = sbr.rel (0) target = $region17
    $region16: #{extract_embedding.1} parent=1 // pred_region
      %701 = dma.done [#allocation3], 32
    $region17: #{extract_embedding.1} parent=1 // pred_fallthru
      _
    %702 = vsyncpa [#allocation3], 1

</llo_original>
